<compile_context>
chip_gen: v5e
topology: v5e:2x2
jax: 0.10.0
libtpu: 0.0.40
codegen_flags: <defaults>
</compile_context>

<pallas_src>
import jax
import jax.numpy as jnp
from jax.experimental import pallas as pl
from jax.experimental.pallas import tpu as pltpu


def _round_up(x, m):
    return ((x + m - 1) // m) * m


def _round_down(x, m):
    return (x // m) * m


# ---------------------------------------------------------------------------
# Hardware / tiling plan (computed ONCE, not per call)
# ---------------------------------------------------------------------------
def _vmem_limit_bytes():
    """Per-TensorCore VMEM cap handed to the compiler, with headroom for its scratch."""
    try:
        cap = int(getattr(pltpu.get_tpu_info(), "vmem_capacity_bytes", 0)) or (64 << 20)
    except Exception:
        cap = 64 << 20  # conservative fallback = v7x per-TC physical VMEM
    # Leave 16 MiB for compiler-internal scratch / other buffers:
    #   v5e/v6e (128 MiB physical) -> ~112 MiB ; v7x (64 MiB physical) -> ~48 MiB.
    return max(32 << 20, cap - (16 << 20))


def plan_entity_tiling(num_entities, feat_dim, max_batch, *,
                       ent_dtype=jnp.bfloat16, out_dtype=jnp.float32,
                       query_dtype=jnp.float32, target_tile_bytes=4 << 20):
    """Pick the entity tile width by BYTES within a per-generation VMEM budget."""
    E, K = int(num_entities), int(feat_dim)
    B_pad = _round_up(max(int(max_batch), 1), 8)
    ent_item = jnp.dtype(ent_dtype).itemsize
    out_item = jnp.dtype(out_dtype).itemsize
    q_item = jnp.dtype(query_dtype).itemsize

    vmem_limit = _vmem_limit_bytes()

    # Resident (grid-invariant) buffers: query + rank-1 bias (still double-buffered).
    resident = 2 * B_pad * K * q_item + 2 * B_pad * 4
    # Per-entity-column streamed footprint: double-buffered entity tile + output tile.
    per_col = 2 * K * ent_item + 2 * B_pad * out_item
    budget = vmem_limit - resident - (4 << 20)  # extra headroom
    vmem_tile = max(128, budget // max(per_col, 1))

    # ~target_tile_bytes of entity data per grid step so the ~0.35 us per-step pipeline
    # overhead is amortized (doc-measured HBM-roofline knee is ~2 MiB+/step).
    byte_tile = max(128, target_tile_bytes // (K * ent_item))

    e_pad128 = _round_up(E, 128)
    # Keep >= 2 grid steps so both v7x TensorCores get work (no-op on v5e/v6e).
    two_core_cap = _round_down(e_pad128 // 2, 128) if e_pad128 >= 256 else e_pad128

    tile_e = min(byte_tile, vmem_tile, max(two_core_cap, 128), e_pad128)
    tile_e = max(128, _round_down(tile_e, 128))
    e_pad = _round_up(E, tile_e)
    return {"tile_e": int(tile_e), "e_pad": int(e_pad),
            "vmem_limit": int(vmem_limit), "batch_pad": int(B_pad)}


# ---------------------------------------------------------------------------
# Pallas kernel: one fused MXU dot per entity tile + rank-1 BN bias + sigmoid
# ---------------------------------------------------------------------------
def fused_score_kernel(q_ref, bias_ref, ent_ref, o_ref):
    # q_ref   : (B, 2D)      f32 query = [r_val*s_r, i_val*s_i]   (grid-resident)
    # bias_ref: (B, 1)       f32 rank-1 bias from folded entity BatchNorm (resident)
    # ent_ref : (2D, tile_e) bf16 streamed raw entity tile (pre-transposed, fused)
    # o_ref   : (B, tile_e)  sigmoid scores (lane-dense store, dtype parameterized)
    scores = jnp.dot(q_ref[...], ent_ref[...], preferred_element_type=jnp.float32)
    o_ref[...] = jax.nn.sigmoid(scores + bias_ref[...]).astype(o_ref.dtype)


def fused_rotate_scores(q, bias, ent_t, plan, *, num_entities,
                        out_dtype=jnp.float32, unpad=True):
    """score = sigmoid(q @ ent_t + bias), tiled over the (pre-padded) entity axis.

    q     : (B, 2D)   f32 query (already BN-folded)
    bias  : (B, 1)    f32 rank-1 bias
    ent_t : (2D, e_pad) fused, pre-transposed, pre-padded raw entity table (bf16)
    """
    B, K = q.shape
    K2, e_pad = ent_t.shape
    assert K == K2, "query feature dim must match entity table"
    tile_e = plan["tile_e"]
    assert e_pad % tile_e == 0, "entity table must be pre-padded to the planned tile"

    B_pad = _round_up(B, 8)
    if B_pad != B:  # tiny (B,2D) pad; callers should pass B % 8 == 0 to avoid it
        q = jnp.pad(q, ((0, B_pad - B), (0, 0)))
        bias = jnp.pad(bias, ((0, B_pad - B), (0, 0)))
    q = q.astype(jnp.float32)
    bias = bias.astype(jnp.float32)

    grid = (e_pad // tile_e,)
    out = pl.pallas_call(
        fused_score_kernel,
        out_shape=jax.ShapeDtypeStruct((B_pad, e_pad), out_dtype),
        grid_spec=pltpu.PrefetchScalarGridSpec(
            num_scalar_prefetch=0,
            grid=grid,
            in_specs=[
                pl.BlockSpec((B_pad, K), lambda j: (0, 0)),       # query, resident
                pl.BlockSpec((B_pad, 1), lambda j: (0, 0)),       # bias, resident
                pl.BlockSpec((K, tile_e), lambda j: (0, j)),      # entity tile, streamed
            ],
            out_specs=pl.BlockSpec((B_pad, tile_e), lambda j: (0, j)),
        ),
        compiler_params=pltpu.CompilerParams(
            dimension_semantics=("parallel",),     # shards entity tiles across v7x TCs
            vmem_limit_bytes=plan["vmem_limit"],
        ),
    )(q, bias, ent_t)

    if unpad:
        # NOTE: this slice copies the (B,E) output; skip it (unpad=False) if the
        # consumer can mask/ignore the padded tail columns (they hold sigmoid(bias)).
        out = out[:B, :num_entities]
    return out


# ---------------------------------------------------------------------------
# Plain-JAX glue: params, BatchNorm(eval) fold, embedding gather, rotate-mul
# ---------------------------------------------------------------------------
def batchnorm_eval(x, p, eps=1e-5):
    return (x - p["mean"]) * jax.lax.rsqrt(p["var"] + eps) * p["gamma"] + p["beta"]


def bn_scale_shift(p, eps=1e-5):
    # BN(x) = x * s + t   with   s = gamma/sqrt(var+eps),  t = beta - mean*s
    s = p["gamma"] * jax.lax.rsqrt(p["var"] + eps)
    t = p["beta"] - p["mean"] * s
    return s, t


def prepare_scoring(params, *, max_batch, ent_dtype=jnp.bfloat16,
                    out_dtype=jnp.float32, target_tile_bytes=4 << 20):
    """One-time prep: tiling plan + RAW entity tables concatenated along the feature
    axis, transposed to (2D, E), padded to the planned tile multiple, cast to the
    streaming dtype.  Cache and reuse across calls (no per-call pad/transpose)."""
    E, D = params["emb_ent_real"].shape
    K = 2 * D
    plan = plan_entity_tiling(E, K, max_batch, ent_dtype=ent_dtype,
                              out_dtype=out_dtype, query_dtype=jnp.float32,
                              target_tile_bytes=target_tile_bytes)
    fused = jnp.concatenate(
        [params["emb_ent_real"].T, params["emb_ent_i"].T], axis=0)  # (2D, E)
    if plan["e_pad"] != E:
        fused = jnp.pad(fused, ((0, 0), (0, plan["e_pad"] - E)))
    return {"ent_t": fused.astype(ent_dtype), "plan": plan,
            "num_entities": int(E), "out_dtype": out_dtype}


def make_params(key, num_entities, num_relations, embedding_dim):
    ks = jax.random.split(key, 8)
    scale = 0.1
    params = {
        "emb_ent_real": scale * jax.random.normal(ks[0], (num_entities, embedding_dim), jnp.float32),
        "emb_ent_i":    scale * jax.random.normal(ks[1], (num_entities, embedding_dim), jnp.float32),
        "emb_rel_real": scale * jax.random.normal(ks[2], (num_relations, embedding_dim), jnp.float32),
        "emb_rel_i":    scale * jax.random.normal(ks[3], (num_relations, embedding_dim), jnp.float32),
    }

    # Non-trivial eval-mode BatchNorm running stats / affine so the folded-BN path is
    # actually exercised by the correctness check.
    def bn_init(k, dim):
        k1, k2, k3, k4 = jax.random.split(k, 4)
        return {
            "gamma": 1.0 + 0.2 * jax.random.normal(k1, (dim,), jnp.float32),
            "beta": 0.05 * jax.random.normal(k2, (dim,), jnp.float32),
            "mean": 0.05 * jax.random.normal(k3, (dim,), jnp.float32),
            "var": 1.0 + 0.3 * jax.random.uniform(k4, (dim,), jnp.float32),
        }

    for name, k in zip(["bn_ent_real", "bn_ent_i", "bn_rel_real", "bn_rel_i"], ks[4:]):
        params[name] = bn_init(k, embedding_dim)
    return params


def forward_head_batch(params, scoring, h_idx, r_idx, *, unpad=True):
    # Embedding gathers (tiny (B, D) work) + eval-mode BN on the relation embeddings.
    a_h = jnp.take(params["emb_ent_real"], h_idx, axis=0)
    b_h = jnp.take(params["emb_ent_i"], h_idx, axis=0)
    a_r = batchnorm_eval(jnp.take(params["emb_rel_real"], r_idx, axis=0), params["bn_rel_real"])
    b_r = batchnorm_eval(jnp.take(params["emb_rel_i"], r_idx, axis=0), params["bn_rel_i"])

    # Complex rotation (hoisted out of the entity loop — (B, D) elementwise).
    r_val = a_h * a_r - b_h * b_r
    i_val = a_h * b_r + b_h * a_r

    # Fold entity BatchNorm into the query: scale the query, add a rank-1 bias.
    s_r, t_r = bn_scale_shift(params["bn_ent_real"])
    s_i, t_i = bn_scale_shift(params["bn_ent_i"])
    q = jnp.concatenate([r_val * s_r, i_val * s_i], axis=1)        # (B, 2D) f32
    bias = (r_val @ t_r + i_val @ t_i)[:, None]                    # (B, 1)  f32

    return fused_rotate_scores(q, bias, scoring["ent_t"], scoring["plan"],
                               num_entities=scoring["num_entities"],
                               out_dtype=scoring["out_dtype"], unpad=unpad)


def forward_head_batch_reference(params, h_idx, r_idx):
    # Pure-JAX f32 reference mirroring the PyTorch forward (eval mode, no conv gating).
    bn = batchnorm_eval
    a_h = jnp.take(params["emb_ent_real"], h_idx, axis=0)
    b_h = jnp.take(params["emb_ent_i"], h_idx, axis=0)
    a_r = bn(jnp.take(params["emb_rel_real"], r_idx, axis=0), params["bn_rel_real"])
    b_r = bn(jnp.take(params["emb_rel_i"], r_idx, axis=0), params["bn_rel_i"])
    r_val = a_h * a_r - b_h * b_r
    i_val = a_h * b_r + b_h * a_r
    real_score = r_val @ bn(params["emb_ent_real"], params["bn_ent_real"]).T
    i_score = i_val @ bn(params["emb_ent_i"], params["bn_ent_i"]).T
    return jax.nn.sigmoid(real_score + i_score)


if __name__ == "__main__":
    num_entities = 256
    num_relations = 16
    embedding_dim = 32
    batch = 16   # multiple of 8; real callers should batch >=128 queries per call

    key = jax.random.PRNGKey(0)
    kp, kh, kr = jax.random.split(key, 3)
    params = make_params(kp, num_entities, num_relations, embedding_dim)

    # One-time entity-table prep (fused + transposed + padded + bf16) and tiling plan.
    scoring = prepare_scoring(params, max_batch=batch, out_dtype=jnp.float32)

    h_idx = jax.random.randint(kh, (batch,), 0, num_entities, dtype=jnp.int32)
    r_idx = jax.random.randint(kr, (batch,), 0, num_relations, dtype=jnp.int32)

    out = forward_head_batch(params, scoring, h_idx, r_idx)
    out = jax.block_until_ready(out)

    ref = forward_head_batch_reference(params, h_idx, r_idx)
    assert out.shape == (batch, num_entities)
    # Only the streamed entity table is bf16 (query stays f32, f32 MXU accumulation):
    # tight absolute tolerance holds.
    assert jnp.allclose(out, ref, atol=2e-3, rtol=1e-3), \
        f"max abs err {jnp.max(jnp.abs(out - ref))}"

    print("KERNEL_OK")
</pallas_src>

<mosaic_0001>
module attributes {stable_mosaic.version = 11 : i64} {
  func.func @fused_score_kernel(%arg0: i32, %arg1: memref<16x64xf32, #tpu.memory_space<vmem>>, %arg2: memref<16x1xf32, #tpu.memory_space<vmem>>, %arg3: memref<64x128xbf16, #tpu.memory_space<vmem>>, %arg4: memref<16x128xf32, #tpu.memory_space<vmem>>) attributes {dimension_semantics = [#tpu.dimension_semantics<parallel>], iteration_bounds = array<i64: 2>, scalar_prefetch = 0 : i64, scratch_operands = 0 : i64, tpu.core_type = #tpu.core_type<tc>, window_params = [{pipeline_mode = #tpu.pipeline_mode<synchronous>, transform_indices = @transform_0, window_bounds = array<i64: 16, 64>}, {pipeline_mode = #tpu.pipeline_mode<synchronous>, transform_indices = @transform_1, window_bounds = array<i64: 16, 1>}, {transform_indices = @transform_2, window_bounds = array<i64: 64, 128>}, {transform_indices = @transform_3, window_bounds = array<i64: 16, 128>}]} {
    %c0 = arith.constant 0 : index
    %c0_0 = arith.constant 0 : index
    %0 = vector.load %arg1[%c0, %c0_0] : memref<16x64xf32, #tpu.memory_space<vmem>>, vector<16x64xf32>
    %c0_1 = arith.constant 0 : index
    %c0_2 = arith.constant 0 : index
    %1 = vector.load %arg3[%c0_1, %c0_2] : memref<64x128xbf16, #tpu.memory_space<vmem>>, vector<64x128xbf16>
    %cst = arith.constant dense<0.000000e+00> : vector<16x128xf32>
    %2 = tpu.matmul %0, %1, %cst {dimension_numbers = #tpu.dot_dimension_numbers<[1], [0], [0], [1], [0, 0, 1, 1], [], []>} : vector<16x64xf32>, vector<64x128xbf16>, vector<16x128xf32> -> vector<16x128xf32>
    %c0_3 = arith.constant 0 : index
    %c0_4 = arith.constant 0 : index
    %3 = vector.load %arg2[%c0_3, %c0_4] : memref<16x1xf32, #tpu.memory_space<vmem>>, vector<16x1xf32>
    %4 = vector.broadcast %3 : vector<16x1xf32> to vector<16x128xf32>
    %5 = arith.addf %2, %4 : vector<16x128xf32>
    %6 = arith.negf %5 : vector<16x128xf32>
    %7 = math.exp %6 : vector<16x128xf32>
    %cst_5 = arith.constant 1.000000e+00 : f32
    %8 = vector.broadcast %cst_5 : f32 to vector<16x128xf32>
    %9 = arith.addf %8, %7 : vector<16x128xf32>
    %10 = arith.divf %8, %9 : vector<16x128xf32>
    %c0_6 = arith.constant 0 : index
    %c0_7 = arith.constant 0 : index
    %11 = vector.load %arg4[%c0_6, %c0_7] : memref<16x128xf32, #tpu.memory_space<vmem>>, vector<16x128xf32>
    tpu.vector_store %arg4[%c0_6, %c0_7], %10 {strides = array<i32>} : memref<16x128xf32, #tpu.memory_space<vmem>>, vector<16x128xf32>,
    return
  }
  func.func @transform_0(%arg0: i32) -> (i32, i32) {
    %c0_i32 = arith.constant 0 : i32
    %c0_i32_0 = arith.constant 0 : i32
    %c0_i32_1 = arith.constant 0 : i32
    return %c0_i32, %c0_i32_0 : i32, i32
  }
  func.func @transform_1(%arg0: i32) -> (i32, i32) {
    %c0_i32 = arith.constant 0 : i32
    %c0_i32_0 = arith.constant 0 : i32
    %c0_i32_1 = arith.constant 0 : i32
    return %c0_i32, %c0_i32_0 : i32, i32
  }
  func.func @transform_2(%arg0: i32) -> (i32, i32) {
    %c0_i32 = arith.constant 0 : i32
    %c0_i32_0 = arith.constant 0 : i32
    return %c0_i32, %arg0 : i32, i32
  }
  func.func @transform_3(%arg0: i32) -> (i32, i32) {
    %c0_i32 = arith.constant 0 : i32
    %c0_i32_0 = arith.constant 0 : i32
    return %c0_i32, %arg0 : i32, i32
  }
}

</mosaic_0001>

<llo_original>
// kernel: tpu_custom_call.1
$region0: #{tpu_custom_call.1}
  #allocation0 [shape = 'u32[]', space=smem, size = 0x4, offset = 0x4, fixed_abs, tag = 'smem constant byte address 0x4 - core index']
  #allocation1 [shape = 'u32[72,128]{1,0:T(1,128)}', space=vmem, size = 0x9000, scoped, tag = 'internal scratch']
  %s0 = inlined_call_operand.vmem [shape: f32[16,64], index: 0, kind: input, shape index: {}]
  %s1 = inlined_call_operand.vmem [shape: f32[16,1], index: 1, kind: input, shape index: {}]
  %s2 = inlined_call_operand.hbm [shape: bf16[64,256], index: 2, kind: input, shape index: {}]
  %s3 = inlined_call_operand.hbm [shape: f32[16,256], index: 3, kind: output, shape index: {}]
  %s4 = sld [smem:[#allocation0]]
  $region49: #{tpu_custom_call.1} parent=0
    _
  %s6 = ssub.s32 1, %s4
  %s7 = scalar_select 0, %s6, %s4
  $region1: #{tpu_custom_call.1} parent=0
    #allocation2 [shape = 'u8[32768]{0}', space=vmem, size = 0x8000, scoped, tag = 'input window, operand 2']
    #allocation3 [shape = 's32[2]{0}', space=sflag, size = 0x8, scoped, tag = 'scoped memory for tpu_custom_call.1']
    #allocation4 [shape = 's32[2]{0}', space=sflag, size = 0x8, scoped, tag = 'scoped memory for tpu_custom_call.1']
    #allocation5 [shape = 'u8[16384]{0}', space=vmem, size = 0x4000, scoped, tag = 'output window, operand 0']
    %8 = vsyncpa [#allocation3], 0
    %s9 = scalar_lea.sflag [#allocation3], 1
    %10 = vsyncpa %s9, 0
    %11 = vsyncpa [#allocation4], 0
    %s12 = scalar_lea.sflag [#allocation4], 1
    %13 = vsyncpa %s12, 0
    loop: start=0, step=1, limit=4
    $region2: #{tpu_custom_call.1} parent=1 // loop_pre_header
      _
    $region3: #{tpu_custom_call.1} parent=1 // loop_header
      %s15 = sphi 0, %s19
      %p16 = scmp.ge.s32.totalorder %s15, 4
      %s23 = sphi 0, %s23
      %s25 = sphi 0, %s23
      %s26 = sphi 0, %s25
      %s40 = sphi 0, %s26
      %s44 = sphi 0, %s44
      %s46 = sphi 0, %s44
      %s47 = sphi 0, %s46
      %s61 = sphi 0, %s47
      %s67 = sphi 0, %s69
      %s70 = sphi 0, %s67
      %s71 = sphi 0, %s70
      %s87 = sphi 0, %s71
      %s93 = sphi 0, %s95
      %s96 = sphi 0, %s93
      %s97 = sphi 0, %s96
      %s113 = sphi 0, %s97
    $region4: #{tpu_custom_call.1} parent=1 // loop_header_branch
      %18 = sbr.rel (%p16) target = $region8
    $region5: #{tpu_custom_call.1} parent=1 // loop_body
      %s20 = ssub.s32 %s15, 1
      %s21 = ssub.s32 %s15, 2
      %s22 = sadd.s32 %s15, 1
      %s24 = sadd.s32 %s23, 1
      %p27 = scmp.eq.s32.totalorder %s15, 1
      %p28 = scmp.ne.s32.totalorder %s23, %s25
      %p29 = scmp.eq.s32.totalorder %s15, 0
      %p30 = por %p28, %p29
      %p31 = scmp.ne.s32.totalorder %s23, %s25
      %p32 = scmp.eq.s32.totalorder %s20, 1
      %p33 = por %p31, %p32
      %p34 = scmp.ne.s32.totalorder %s25, %s26
      %p35 = scmp.eq.s32.totalorder %s20, 0
      %p36 = por %p34, %p35
      %p37 = scmp.ne.s32.totalorder %s25, %s26
      %p38 = scmp.eq.s32.totalorder %s21, 1
      %p39 = por %p37, %p38
      %p41 = scmp.ne.s32.totalorder %s26, %s40
      %p42 = scmp.eq.s32.totalorder %s21, 0
      %p43 = por %p41, %p42
      %s45 = sadd.s32 %s44, 1
      %p48 = scmp.eq.s32.totalorder %s15, 1
      %p49 = scmp.ne.s32.totalorder %s44, %s46
      %p50 = scmp.eq.s32.totalorder %s15, 0
      %p51 = por %p49, %p50
      %p52 = scmp.ne.s32.totalorder %s44, %s46
      %p53 = scmp.eq.s32.totalorder %s20, 1
      %p54 = por %p52, %p53
      %p55 = scmp.ne.s32.totalorder %s46, %s47
      %p56 = scmp.eq.s32.totalorder %s20, 0
      %p57 = por %p55, %p56
      %p58 = scmp.ne.s32.totalorder %s46, %s47
      %p59 = scmp.eq.s32.totalorder %s21, 1
      %p60 = por %p58, %p59
      %p62 = scmp.ne.s32.totalorder %s47, %s61
      %p63 = scmp.eq.s32.totalorder %s21, 0
      %p64 = por %p62, %p63
      %s65 = ssub.s32 %s15, %s22
      %p66 = scmp.eq.s32.totalorder %s65, 0
      %s68 = sadd.s32 %s67, 1
      %s69 = scalar_select %p66, %s67, %s68
      %p72 = pneg %p66
      %p73 = scmp.eq.s32.totalorder %s15, 1
      %p74 = por %p72, %p73
      %p75 = scmp.ne.s32.totalorder %s67, %s70
      %p76 = scmp.eq.s32.totalorder %s15, 0
      %p77 = por %p75, %p76
      %p78 = scmp.ne.s32.totalorder %s67, %s70
      %p79 = scmp.eq.s32.totalorder %s20, 1
      %p80 = por %p78, %p79
      %p81 = scmp.ne.s32.totalorder %s70, %s71
      %p82 = scmp.eq.s32.totalorder %s20, 0
      %p83 = por %p81, %p82
      %p84 = scmp.ne.s32.totalorder %s70, %s71
      %p85 = scmp.eq.s32.totalorder %s21, 1
      %p86 = por %p84, %p85
      %p88 = scmp.ne.s32.totalorder %s71, %s87
      %p89 = scmp.eq.s32.totalorder %s21, 0
      %p90 = por %p88, %p89
      %s91 = ssub.s32 %s15, %s22
      %p92 = scmp.eq.s32.totalorder %s91, 0
      %s94 = sadd.s32 %s93, 1
      %s95 = scalar_select %p92, %s93, %s94
      %p98 = pneg %p92
      %p99 = scmp.eq.s32.totalorder %s15, 1
      %p100 = por %p98, %p99
      %p101 = scmp.ne.s32.totalorder %s93, %s96
      %p102 = scmp.eq.s32.totalorder %s15, 0
      %p103 = por %p101, %p102
      %p104 = scmp.ne.s32.totalorder %s93, %s96
      %p105 = scmp.eq.s32.totalorder %s20, 1
      %p106 = por %p104, %p105
      %p107 = scmp.ne.s32.totalorder %s96, %s97
      %p108 = scmp.eq.s32.totalorder %s20, 0
      %p109 = por %p107, %p108
      %p110 = scmp.ne.s32.totalorder %s96, %s97
      %p111 = scmp.eq.s32.totalorder %s21, 1
      %p112 = por %p110, %p111
      %p114 = scmp.ne.s32.totalorder %s97, %s113
      %p115 = scmp.eq.s32.totalorder %s21, 0
      %p116 = por %p114, %p115
      %p117 = scmp.le.s32.totalorder 1, %s15
      %p118 = scmp.lt.s32.totalorder %s15, 3
      %p119 = pnand %p117, %p118
      %p120 = pneg %p119
      // Predicated region
      $region9: #{tpu_custom_call.1} parent=5 // pred_check
        _
      $region10: #{tpu_custom_call.1} parent=5 // pred_check_branch
        %122 = sbr.rel (%p119) target = $region12
      $region11: #{tpu_custom_call.1} parent=5 // pred_region
        %s123 = ssub.s32 %s15, 1
        // Predicated region
        $region13: #{tpu_custom_call.1} parent=11 // pred_check
          %p124 = pneg %p36
        $region14: #{tpu_custom_call.1} parent=11 // pred_check_branch
          %126 = sbr.rel (%p124) target = $region16
        $region15: #{tpu_custom_call.1} parent=11 // pred_region
          _
        $region16: #{tpu_custom_call.1} parent=11 // pred_fallthru
          _
        // Predicated region
        $region17: #{tpu_custom_call.1} parent=11 // pred_check
          %p127 = pneg %p57
        $region18: #{tpu_custom_call.1} parent=11 // pred_check_branch
          %129 = sbr.rel (%p127) target = $region20
        $region19: #{tpu_custom_call.1} parent=11 // pred_region
          _
        $region20: #{tpu_custom_call.1} parent=11 // pred_fallthru
          _
      $region12: #{tpu_custom_call.1} parent=5 // pred_fallthru
        _
      %p130 = scmp.lt.s32.totalorder %s15, 2
      // Predicated region
      $region21: #{tpu_custom_call.1} parent=5 // pred_check
        %p131 = pneg %p130
      $region22: #{tpu_custom_call.1} parent=5 // pred_check_branch
        %133 = sbr.rel (%p131) target = $region24
      $region23: #{tpu_custom_call.1} parent=5 // pred_region
        // Predicated region
        $region25: #{tpu_custom_call.1} parent=23 // pred_check
          %p134 = pneg %p77
        $region26: #{tpu_custom_call.1} parent=23 // pred_check_branch
          %136 = sbr.rel (%p134) target = $region28
        $region27: #{tpu_custom_call.1} parent=23 // pred_region
          %s137 = sand.u32 %s67, 1
          %s138 = scalar_lea.sflag [#allocation3], %s137
          %s139 = sand.u32 %s67, 1
          %s140 = smul.addr %s139, 32
          %s141 = scalar_lea.vmem [#allocation2], %s140
          %143 = vsyncadd %s138, 0
          %s144 = smul.addr %s15, 4
          %s145 = scalar_lea.hbm %s2, %s144
          %s146 = sshll.u32 %s145, 4
          %s147 = int_to_ptr.hbm [resolvable:$true] %s146
          %s148 = sshll.u32 %s141, 4
          %s149 = int_to_ptr.vmem [resolvable:$true] %s148
          %154 = dma.hbm_to_vmem [thread:$0]  %s147, 512, %s149, %s138, 128, 64, 4
        $region28: #{tpu_custom_call.1} parent=23 // pred_fallthru
          _
      $region24: #{tpu_custom_call.1} parent=5 // pred_fallthru
        _
      %p155 = scmp.le.s32.totalorder 1, %s15
      %p156 = scmp.lt.s32.totalorder %s15, 3
      %p157 = pnand %p155, %p156
      %p158 = pneg %p157
      // Predicated region
      $region29: #{tpu_custom_call.1} parent=5 // pred_check
        _
      $region30: #{tpu_custom_call.1} parent=5 // pred_check_branch
        %160 = sbr.rel (%p157) target = $region32
      $region31: #{tpu_custom_call.1} parent=5 // pred_region
        %s161 = ssub.s32 %s15, 1
        %s162 = sand.u32 %s70, 1
        %s163 = scalar_lea.sflag [#allocation3], %s162
        %s164 = sand.u32 %s70, 1
        %s165 = smul.addr %s164, 32
        %s166 = scalar_lea.vmem [#allocation2], %s165
        // Predicated region
        $region33: #{tpu_custom_call.1} parent=31 // pred_check
          %p167 = pneg %p83
        $region34: #{tpu_custom_call.1} parent=31 // pred_check_branch
          %169 = sbr.rel (%p167) target = $region36
        $region35: #{tpu_custom_call.1} parent=31 // pred_region
          %171 = dma.done %s163, 512
        $region36: #{tpu_custom_call.1} parent=31 // pred_fallthru
          _
        %p172 = pneg %p36
        %p173 = pneg %p33
        %p174 = pneg %p57
        %p175 = pneg %p54
        %s176 = sand.u32 %s70, 1
        %s177 = scalar_lea.sflag [#allocation3], %s176
        %s178 = sand.u32 %s70, 1
        %s179 = smul.addr %s178, 32
        %s180 = scalar_lea.vmem [#allocation2], %s179
        %p181 = pneg %p83
        %p182 = pneg %p80
        %p183 = pneg %p109
        %p184 = pneg %p106
        %s185 = sand.u32 %s96, 1
        %s186 = scalar_lea.sflag [#allocation4], %s185
        %s187 = sand.u32 %s96, 1
        %s188 = smul.addr %s187, 16
        %s189 = scalar_lea.vmem [#allocation5], %s188
        %v191 = vld [vmem:[%s0] sm:$0xff]
        %v192 = vld [vmem:[%s0 + $0x8] sm:$0xff]
        %v193 = vld [vmem:[%s166] sm:$0xf]
        %v194 = vld [vmem:[%s166 + $0x4] sm:$0xf]
        %v195 = vld [vmem:[%s166 + $0x8] sm:$0xf]
        %v196 = vld [vmem:[%s166 + $0xc] sm:$0xf]
        %v197 = vld [vmem:[%s166 + $0x10] sm:$0xf]
        %v198 = vld [vmem:[%s166 + $0x14] sm:$0xf]
        %v199 = vld [vmem:[%s166 + $0x18] sm:$0xf]
        %v200 = vld [vmem:[%s166 + $0x1c] sm:$0xf]
        %v201 = vld [vmem:[%s1] sm:$0xff]
        %v202 = vld [vmem:[%s1 + $0x8] sm:$0xff]
        %204 = vset.pattern.permute.xlu0 0
        %205 = vperm.xlu0 %204, %v201
        %v206 = vpop.permute.xlu0 %205
        %209 = vset.pattern.permute.xlu0 0
        %210 = vperm.xlu0 %209, %v202
        %v211 = vpop.permute.xlu0 %210
        %v221 = vunpack.c.l.b16 %v193
        %v222 = vunpack.c.l.b16 %v194
        %v223 = vunpack.c.l.b16 %v195
        %v224 = vunpack.c.l.b16 %v196
        %v225 = vunpack.c.l.b16 %v197
        %v226 = vunpack.c.l.b16 %v198
        %v227 = vunpack.c.l.b16 %v199
        %v228 = vunpack.c.l.b16 %v200
        %v229 = vpack.c.b16 %v222, %v221
        %v230 = vpack.c.b16 %v224, %v223
        %v231 = vpack.c.b16 %v226, %v225
        %v232 = vpack.c.b16 %v228, %v227
        %vm237 = vcmask 523264
        %v239 = vsel %vm237, %v191, 0
        %v242 = vsel %vm237, %v192, 0
        %244 = vmatpush.bf16.msra.mxu0 0
        %245 = vmatpush.bf16.msra.mxu0 0
        %246 = vmatpush.bf16.msra.mxu0 0
        %247 = vmatpush.bf16.msra.mxu0 0
        %248 = vmatpush.bf16.msra.mxu0 %v232
        %249 = vmatpush.bf16.msra.mxu0 %v231
        %250 = vmatpush.bf16.msra.mxu0 %v230
        %251 = vmatpush.bf16.msra.mxu0 %v229
        %252 = vmatmul.f32.gmra.mxu0 %v239
        %v253 = vpop.f32.mrf.mxu0
        %v254 = vadd.f32 %v206, %v253
        %255 = vmatmul.f32.gmra.mxu0 %v242
        %v256 = vpop.f32.mrf.mxu0
        %v257 = vadd.f32 %v211, %v256
        %258 = vdwg.mxu0
        %v259 = vxor.u32 %v254, 2147483648
        %v260 = vxor.u32 %v257, 2147483648
        %v261 = vmul.f32 %v259, 1.442695
        %v262 = vpow.pop %v261
        %v263 = vmul.f32 %v260, 1.442695
        %v264 = vpow.pop %v263
        %v265 = vadd.f32 %v262, 1.0
        %v266 = vadd.f32 %v264, 1.0
        %v267 = vrcp.pop %v265
        %v268 = vmul.f32 %v265, %v267
        %v269 = vsub.f32 1.0, %v268
        %v270 = vmul.f32 %v267, %v269
        %v271 = vadd.f32 %v267, %v270
        %vm272 = vweird.f32 %v265
        %vm273 = vweird.f32 %v267
        %vm274 = vmor %vm272, %vm273
        %v275 = vsel %vm274, %v267, %v271
        %v276 = vand.u32 2147483647, %v265
        %vm277 = vcmp.eq.f32.partialorder %v276, 8.507059e+37
        %v278 = vand.u32 %v265, 2147483648
        %v279 = vor.u32 1.1754944e-38, %v278
        %v280 = vsel %vm277, %v279, %v275
        %v281 = vmul.f32 1.0, %v280
        %v282 = vrcp.pop %v266
        %v283 = vmul.f32 %v266, %v282
        %v284 = vsub.f32 1.0, %v283
        %v285 = vmul.f32 %v282, %v284
        %v286 = vadd.f32 %v282, %v285
        %vm287 = vweird.f32 %v266
        %vm288 = vweird.f32 %v282
        %vm289 = vmor %vm287, %vm288
        %v290 = vsel %vm289, %v282, %v286
        %v291 = vand.u32 2147483647, %v266
        %vm292 = vcmp.eq.f32.partialorder %v291, 8.507059e+37
        %v293 = vand.u32 %v266, 2147483648
        %v294 = vor.u32 1.1754944e-38, %v293
        %v295 = vsel %vm292, %v294, %v290
        %v296 = vmul.f32 1.0, %v295
        %297 = vst [vmem:[%s189] sm:$0xff] %v281
        %298 = vst [vmem:[%s189 + $0x8] sm:$0xff] %v296
        %s299 = sand.u32 %s96, 1
        %s300 = scalar_lea.sflag [#allocation4], %s299
        %s301 = sand.u32 %s96, 1
        %s302 = smul.addr %s301, 16
        %s303 = scalar_lea.vmem [#allocation5], %s302
        // Predicated region
        $region37: #{tpu_custom_call.1} parent=31 // pred_check
          %p304 = pneg %p106
        $region38: #{tpu_custom_call.1} parent=31 // pred_check_branch
          %306 = sbr.rel (%p304) target = $region40
        $region39: #{tpu_custom_call.1} parent=31 // pred_region
          %308 = vsyncadd %s300, 0
          %s309 = smul.addr %s20, 8
          %s310 = scalar_lea.hbm %s3, %s309
          %s311 = sshll.u32 %s303, 4
          %s312 = int_to_ptr.vmem [resolvable:$true] %s311
          %s313 = sshll.u32 %s310, 4
          %s314 = int_to_ptr.hbm [resolvable:$true] %s313
          %319 = dma.vmem_to_hbm [thread:$0]  %s312, 256, %s314, %s300, 128, 256, 8
        $region40: #{tpu_custom_call.1} parent=31 // pred_fallthru
          _
      $region32: #{tpu_custom_call.1} parent=5 // pred_fallthru
        _
      %p320 = scmp.le.s32.totalorder 2, %s15
      // Predicated region
      $region41: #{tpu_custom_call.1} parent=5 // pred_check
        %p321 = pneg %p320
      $region42: #{tpu_custom_call.1} parent=5 // pred_check_branch
        %323 = sbr.rel (%p321) target = $region44
      $region43: #{tpu_custom_call.1} parent=5 // pred_region
        %s324 = ssub.s32 %s15, 2
        // Predicated region
        $region45: #{tpu_custom_call.1} parent=43 // pred_check
          %p325 = pneg %p112
        $region46: #{tpu_custom_call.1} parent=43 // pred_check_branch
          %327 = sbr.rel (%p325) target = $region48
        $region47: #{tpu_custom_call.1} parent=43 // pred_region
          %s328 = sand.u32 %s97, 1
          %s329 = scalar_lea.sflag [#allocation4], %s328
          %s330 = sand.u32 %s97, 1
          %s331 = smul.addr %s330, 16
          %s332 = scalar_lea.vmem [#allocation5], %s331
          %334 = dma.done %s329, 256
        $region48: #{tpu_custom_call.1} parent=43 // pred_fallthru
          _
      $region44: #{tpu_custom_call.1} parent=5 // pred_fallthru
        _
    $region6: #{tpu_custom_call.1} parent=1 // loop_footer
      %s19 = sadd.s32 1, %s15
    $region7: #{tpu_custom_call.1} parent=1 // loop_footer_branch
      %14 = sbr.rel target = $region3
    $region8: #{tpu_custom_call.1} parent=1 // loop_exit
      _
    %335 = vsyncpa [#allocation3], 1
    %s336 = scalar_lea.sflag [#allocation3], 1
    %337 = vsyncpa %s336, 1
    %338 = vsyncpa [#allocation4], 1
    %s339 = scalar_lea.sflag [#allocation4], 1
    %340 = vsyncpa %s339, 1

</llo_original>
